<compile_context>
chip_gen: v5e
topology: v5e:2x2
jax: 0.10.0
libtpu: 0.0.40
codegen_flags: <defaults>
</compile_context>

<pallas_src>
import functools

import jax
import jax.numpy as jnp
from jax.experimental import pallas as pl
from jax.experimental.pallas import tpu as pltpu

LANE = 128
SUBLANE = 8


def _round_up(x, m):
    return ((x + m - 1) // m) * m


def _vmem_capacity_bytes():
    """Per-core VMEM capacity; conservative fallback if the query is unavailable."""
    try:
        info = pltpu.get_tpu_info()
        cap = getattr(info, "vmem_capacity_bytes", None)
        if cap:
            return int(cap)
    except Exception:
        pass
    return 64 * 1024 * 1024  # v7x-safe default


def actor_kernel(x_ref,
                 w1_ref, b1_ref,
                 w2_ref, b2_ref,
                 w3_ref, b3_ref,
                 w4_ref, b4_ref,
                 out_ref, *, compute_dtype):
    """One batch tile: 4x (matmul + bias) with relu / relu / hardswish / tanh."""

    def dense(h, w_ref, b_ref):
        # MXU matmul in compute_dtype (bf16 on v6e/v7x when requested), f32
        # accumulation; all elementwise math stays f32 (v5e has no bf16 VPU/EUP).
        return (jnp.dot(h.astype(compute_dtype), w_ref[...].astype(compute_dtype),
                        preferred_element_type=jnp.float32)
                + b_ref[...].astype(jnp.float32))

    h = jnp.maximum(dense(x_ref[...].astype(jnp.float32), w1_ref, b1_ref), 0.0)
    h = jnp.maximum(dense(h, w2_ref, b2_ref), 0.0)
    h = dense(h, w3_ref, b3_ref)
    h = h * jnp.clip(h + 3.0, 0.0, 6.0) * (1.0 / 6.0)          # hardswish
    out_ref[...] = jnp.tanh(dense(h, w4_ref, b4_ref)).astype(out_ref.dtype)


def prepare_actor_params(params, *, param_dtype=jnp.float32):
    """One-time prep (out of the hot path): zero-pad the hidden dim to a lane
    multiple and optionally cast weights to bf16. The streamed dims
    (state_dim, action_dim) are intentionally left unpadded. Zero padding is
    exact: padded hidden lanes stay 0 through relu/hardswish and contribute 0
    to the final layer."""
    state_dim, mid_dim = params["w1"].shape
    action_dim = params["w4"].shape[1]
    m_pad = _round_up(mid_dim, LANE)

    def pad2(a, rows, cols, dt):
        a = a.astype(dt)
        return jnp.pad(a, ((0, rows - a.shape[0]), (0, cols - a.shape[1])))

    return {
        "w1": pad2(params["w1"], state_dim, m_pad, param_dtype),
        "b1": pad2(params["b1"], 1, m_pad, jnp.float32),
        "w2": pad2(params["w2"], m_pad, m_pad, param_dtype),
        "b2": pad2(params["b2"], 1, m_pad, jnp.float32),
        "w3": pad2(params["w3"], m_pad, m_pad, param_dtype),
        "b3": pad2(params["b3"], 1, m_pad, jnp.float32),
        "w4": pad2(params["w4"], m_pad, action_dim, param_dtype),
        "b4": params["b4"].astype(jnp.float32),
    }


def actor_forward(state, prepped, *, max_batch_tile=4096):
    """state: [B, state_dim] f32. prepped: output of prepare_actor_params."""
    batch, state_dim = state.shape
    assert prepped["w1"].shape[0] == state_dim
    m_pad = prepped["w1"].shape[1]
    action_dim = prepped["w4"].shape[1]
    compute_dtype = prepped["w1"].dtype
    wsize = prepped["w1"].dtype.itemsize

    # VMEM footprint model (bytes). Streamed x / y tiles are double-buffered and
    # occupy lane-padded VMEM; resident weights are single-buffered.
    s_vmem = _round_up(state_dim, LANE)
    a_vmem = _round_up(action_dim, LANE)
    weight_bytes = ((state_dim * m_pad + 2 * m_pad * m_pad + m_pad * action_dim) * wsize
                    + (3 * m_pad + a_vmem) * 4)

    def vmem_estimate(tb_):
        io = 2 * tb_ * (s_vmem + a_vmem) * 4      # double-buffered streamed tiles
        act = 3 * tb_ * m_pad * 4                 # live f32 activation temporaries
        return io + act + weight_bytes

    vmem_cap = _vmem_capacity_bytes()
    vmem_budget = int(0.70 * vmem_cap)
    vmem_limit = int(0.90 * vmem_cap)

    tb = min(max_batch_tile, _round_up(batch, SUBLANE))
    tb = max(SUBLANE, _round_up(tb, SUBLANE))
    while tb > SUBLANE and vmem_estimate(tb) > vmem_budget:
        tb = max(SUBLANE, _round_up(tb // 2, SUBLANE))

    # v7x megacore: keep >= 2 grid steps when the batch allows it so the
    # "parallel" batch axis can shard across both TensorCores.
    if pl.cdiv(batch, tb) == 1 and batch > SUBLANE:
        tb = max(SUBLANE, _round_up(pl.cdiv(batch, 2), SUBLANE))

    grid = (pl.cdiv(batch, tb),)   # ragged last block: OOB rows masked on store

    def resident(shape):
        # Constant index_map -> block stays VMEM-resident across grid steps;
        # single-buffered since it is only DMA'd once.
        return pl.BlockSpec(shape, lambda i: (0, 0), pipeline_mode=pl.Buffered(1))

    cost = pl.CostEstimate(
        flops=int(2 * batch * (state_dim * m_pad + 2 * m_pad * m_pad
                               + m_pad * action_dim)),
        transcendentals=int(batch * action_dim),
        bytes_accessed=int(4 * batch * (state_dim + action_dim) + weight_bytes),
    )

    return pl.pallas_call(
        functools.partial(actor_kernel, compute_dtype=compute_dtype),
        out_shape=jax.ShapeDtypeStruct((batch, action_dim), jnp.float32),
        grid=grid,
        in_specs=[
            pl.BlockSpec((tb, state_dim), lambda i: (i, 0)),
            resident(prepped["w1"].shape), resident(prepped["b1"].shape),
            resident(prepped["w2"].shape), resident(prepped["b2"].shape),
            resident(prepped["w3"].shape), resident(prepped["b3"].shape),
            resident(prepped["w4"].shape), resident(prepped["b4"].shape),
        ],
        out_specs=pl.BlockSpec((tb, action_dim), lambda i: (i, 0)),
        compiler_params=pltpu.CompilerParams(
            dimension_semantics=("parallel",),
            vmem_limit_bytes=vmem_limit,
        ),
        cost_estimate=cost,
    )(state, prepped["w1"], prepped["b1"], prepped["w2"], prepped["b2"],
      prepped["w3"], prepped["b3"], prepped["w4"], prepped["b4"])


def init_actor_params(key, state_dim, mid_dim, action_dim):
    """Deterministic init matching the module's layer shapes.
    PyTorch nn.Linear stores W as (out, in); we store the transpose (in, out)."""
    dims = [(state_dim, mid_dim), (mid_dim, mid_dim),
            (mid_dim, mid_dim), (mid_dim, action_dim)]
    params = {}
    for i, (din, dout) in enumerate(dims, start=1):
        key, kw, kb = jax.random.split(key, 3)
        bound = 1.0 / jnp.sqrt(jnp.float32(din))  # PyTorch default uniform bound
        params[f"w{i}"] = jax.random.uniform(kw, (din, dout), jnp.float32, -bound, bound)
        params[f"b{i}"] = jax.random.uniform(kb, (1, dout), jnp.float32, -bound, bound)
    return params


def actor_forward_ref(state, params):
    """Pure-JAX reference for correctness check."""
    h = jnp.maximum(state @ params["w1"] + params["b1"], 0.0)
    h = jnp.maximum(h @ params["w2"] + params["b2"], 0.0)
    h = h @ params["w3"] + params["b3"]
    h = h * jnp.clip(h + 3.0, 0.0, 6.0) / 6.0
    return jnp.tanh(h @ params["w4"] + params["b4"])


# TODO(synk): Actor.get_action (noise sampling + clamp) is a separate method,
# not part of forward(); it is intentionally not implemented here.

if __name__ == "__main__":
    key = jax.random.PRNGKey(0)
    batch, state_dim, mid_dim, action_dim = 8, 16, 32, 4

    key, kp, ks = jax.random.split(key, 3)
    params = init_actor_params(kp, state_dim, mid_dim, action_dim)
    state = jax.random.normal(ks, (batch, state_dim), jnp.float32)

    prepped = prepare_actor_params(params)          # one-time, out of hot path
    out = jax.block_until_ready(actor_forward(state, prepped))
    ref = actor_forward_ref(state, params)
    assert out.shape == (batch, action_dim)
    assert jnp.allclose(out, ref, atol=1e-5, rtol=1e-5), "mismatch vs reference"

    # Multi-step grid with a ragged last block (batch not a multiple of tb).
    key, ks2 = jax.random.split(key)
    state2 = jax.random.normal(ks2, (20, state_dim), jnp.float32)
    out2 = jax.block_until_ready(actor_forward(state2, prepped, max_batch_tile=8))
    ref2 = actor_forward_ref(state2, params)
    assert out2.shape == (20, action_dim)
    assert jnp.allclose(out2, ref2, atol=1e-5, rtol=1e-5), "mismatch (gridded)"

    # bf16 MXU operands (v6e/v7x lever), f32 accumulation + f32 activations.
    prepped_bf16 = prepare_actor_params(params, param_dtype=jnp.bfloat16)
    out3 = jax.block_until_ready(actor_forward(state2, prepped_bf16))
    assert out3.shape == (20, action_dim)
    assert jnp.allclose(out3, ref2, atol=5e-2, rtol=5e-2), "mismatch (bf16)"

    print("KERNEL_OK")
</pallas_src>

<mosaic_0001>
module attributes {stable_mosaic.version = 11 : i64} {
  func.func @actor_kernel(%arg0: i32, %arg1: memref<8x16xf32, #tpu.memory_space<vmem>>, %arg2: memref<16x128xf32, #tpu.memory_space<vmem>>, %arg3: memref<1x128xf32, #tpu.memory_space<vmem>>, %arg4: memref<128x128xf32, #tpu.memory_space<vmem>>, %arg5: memref<1x128xf32, #tpu.memory_space<vmem>>, %arg6: memref<128x128xf32, #tpu.memory_space<vmem>>, %arg7: memref<1x128xf32, #tpu.memory_space<vmem>>, %arg8: memref<128x4xf32, #tpu.memory_space<vmem>>, %arg9: memref<1x4xf32, #tpu.memory_space<vmem>>, %arg10: memref<8x4xf32, #tpu.memory_space<vmem>>) attributes {dimension_semantics = [#tpu.dimension_semantics<parallel>], iteration_bounds = array<i64: 1>, scalar_prefetch = 0 : i64, scratch_operands = 0 : i64, tpu.core_type = #tpu.core_type<tc>, window_params = [{transform_indices = @transform_0, window_bounds = array<i64: 8, 16>}, {pipeline_mode = #tpu.pipeline_mode<synchronous>, transform_indices = @transform_1, window_bounds = array<i64: 16, 128>}, {pipeline_mode = #tpu.pipeline_mode<synchronous>, transform_indices = @transform_2, window_bounds = array<i64: 1, 128>}, {pipeline_mode = #tpu.pipeline_mode<synchronous>, transform_indices = @transform_3, window_bounds = array<i64: 128, 128>}, {pipeline_mode = #tpu.pipeline_mode<synchronous>, transform_indices = @transform_4, window_bounds = array<i64: 1, 128>}, {pipeline_mode = #tpu.pipeline_mode<synchronous>, transform_indices = @transform_5, window_bounds = array<i64: 128, 128>}, {pipeline_mode = #tpu.pipeline_mode<synchronous>, transform_indices = @transform_6, window_bounds = array<i64: 1, 128>}, {pipeline_mode = #tpu.pipeline_mode<synchronous>, transform_indices = @transform_7, window_bounds = array<i64: 128, 4>}, {pipeline_mode = #tpu.pipeline_mode<synchronous>, transform_indices = @transform_8, window_bounds = array<i64: 1, 4>}, {transform_indices = @transform_9, window_bounds = array<i64: 8, 4>}]} {
    %c0 = arith.constant 0 : index
    %c0_0 = arith.constant 0 : index
    %0 = vector.load %arg1[%c0, %c0_0] : memref<8x16xf32, #tpu.memory_space<vmem>>, vector<8x16xf32>
    %c0_1 = arith.constant 0 : index
    %c0_2 = arith.constant 0 : index
    %1 = vector.load %arg2[%c0_1, %c0_2] : memref<16x128xf32, #tpu.memory_space<vmem>>, vector<16x128xf32>
    %cst = arith.constant dense<0.000000e+00> : vector<8x128xf32>
    %2 = tpu.matmul %0, %1, %cst {dimension_numbers = #tpu.dot_dimension_numbers<[1], [0], [0], [1], [0, 0, 1, 1], [], []>} : vector<8x16xf32>, vector<16x128xf32>, vector<8x128xf32> -> vector<8x128xf32>
    %c0_3 = arith.constant 0 : index
    %c0_4 = arith.constant 0 : index
    %3 = vector.load %arg3[%c0_3, %c0_4] : memref<1x128xf32, #tpu.memory_space<vmem>>, vector<1x128xf32>
    %4 = vector.broadcast %3 : vector<1x128xf32> to vector<8x128xf32>
    %5 = arith.addf %2, %4 : vector<8x128xf32>
    %cst_5 = arith.constant 0.000000e+00 : f32
    %6 = vector.broadcast %cst_5 : f32 to vector<8x128xf32>
    %7 = arith.maximumf %5, %6 : vector<8x128xf32>
    %c0_6 = arith.constant 0 : index
    %c0_7 = arith.constant 0 : index
    %8 = vector.load %arg4[%c0_6, %c0_7] : memref<128x128xf32, #tpu.memory_space<vmem>>, vector<128x128xf32>
    %cst_8 = arith.constant dense<0.000000e+00> : vector<8x128xf32>
    %9 = tpu.matmul %7, %8, %cst_8 {dimension_numbers = #tpu.dot_dimension_numbers<[1], [0], [0], [1], [0, 0, 1, 1], [], []>} : vector<8x128xf32>, vector<128x128xf32>, vector<8x128xf32> -> vector<8x128xf32>
    %c0_9 = arith.constant 0 : index
    %c0_10 = arith.constant 0 : index
    %10 = vector.load %arg5[%c0_9, %c0_10] : memref<1x128xf32, #tpu.memory_space<vmem>>, vector<1x128xf32>
    %11 = vector.broadcast %10 : vector<1x128xf32> to vector<8x128xf32>
    %12 = arith.addf %9, %11 : vector<8x128xf32>
    %cst_11 = arith.constant 0.000000e+00 : f32
    %13 = vector.broadcast %cst_11 : f32 to vector<8x128xf32>
    %14 = arith.maximumf %12, %13 : vector<8x128xf32>
    %c0_12 = arith.constant 0 : index
    %c0_13 = arith.constant 0 : index
    %15 = vector.load %arg6[%c0_12, %c0_13] : memref<128x128xf32, #tpu.memory_space<vmem>>, vector<128x128xf32>
    %cst_14 = arith.constant dense<0.000000e+00> : vector<8x128xf32>
    %16 = tpu.matmul %14, %15, %cst_14 {dimension_numbers = #tpu.dot_dimension_numbers<[1], [0], [0], [1], [0, 0, 1, 1], [], []>} : vector<8x128xf32>, vector<128x128xf32>, vector<8x128xf32> -> vector<8x128xf32>
    %c0_15 = arith.constant 0 : index
    %c0_16 = arith.constant 0 : index
    %17 = vector.load %arg7[%c0_15, %c0_16] : memref<1x128xf32, #tpu.memory_space<vmem>>, vector<1x128xf32>
    %18 = vector.broadcast %17 : vector<1x128xf32> to vector<8x128xf32>
    %19 = arith.addf %16, %18 : vector<8x128xf32>
    %cst_17 = arith.constant 3.000000e+00 : f32
    %20 = vector.broadcast %cst_17 : f32 to vector<8x128xf32>
    %21 = arith.addf %19, %20 : vector<8x128xf32>
    %cst_18 = arith.constant 0.000000e+00 : f32
    %cst_19 = arith.constant 6.000000e+00 : f32
    %22 = vector.broadcast %cst_18 : f32 to vector<8x128xf32>
    %23 = arith.maximumf %22, %21 : vector<8x128xf32>
    %24 = vector.broadcast %cst_19 : f32 to vector<8x128xf32>
    %25 = arith.minimumf %24, %23 : vector<8x128xf32>
    %26 = arith.mulf %19, %25 : vector<8x128xf32>
    %cst_20 = arith.constant 0.166666672 : f32
    %27 = vector.broadcast %cst_20 : f32 to vector<8x128xf32>
    %28 = arith.mulf %26, %27 : vector<8x128xf32>
    %c0_21 = arith.constant 0 : index
    %c0_22 = arith.constant 0 : index
    %29 = vector.load %arg8[%c0_21, %c0_22] : memref<128x4xf32, #tpu.memory_space<vmem>>, vector<128x4xf32>
    %cst_23 = arith.constant dense<0.000000e+00> : vector<8x4xf32>
    %30 = tpu.matmul %28, %29, %cst_23 {dimension_numbers = #tpu.dot_dimension_numbers<[1], [0], [0], [1], [0, 0, 1, 1], [], []>} : vector<8x128xf32>, vector<128x4xf32>, vector<8x4xf32> -> vector<8x4xf32>
    %c0_24 = arith.constant 0 : index
    %c0_25 = arith.constant 0 : index
    %31 = vector.load %arg9[%c0_24, %c0_25] : memref<1x4xf32, #tpu.memory_space<vmem>>, vector<1x4xf32>
    %32 = vector.broadcast %31 : vector<1x4xf32> to vector<8x4xf32>
    %33 = arith.addf %30, %32 : vector<8x4xf32>
    %34 = math.tanh %33 : vector<8x4xf32>
    %c0_26 = arith.constant 0 : index
    %c0_27 = arith.constant 0 : index
    %35 = vector.load %arg10[%c0_26, %c0_27] : memref<8x4xf32, #tpu.memory_space<vmem>>, vector<8x4xf32>
    tpu.vector_store %arg10[%c0_26, %c0_27], %34 {strides = array<i32>} : memref<8x4xf32, #tpu.memory_space<vmem>>, vector<8x4xf32>,
    return
  }
  func.func @transform_0(%arg0: i32) -> (i32, i32) {
    %c0_i32 = arith.constant 0 : i32
    %c0_i32_0 = arith.constant 0 : i32
    return %arg0, %c0_i32 : i32, i32
  }
  func.func @transform_1(%arg0: i32) -> (i32, i32) {
    %c0_i32 = arith.constant 0 : i32
    %c0_i32_0 = arith.constant 0 : i32
    %c0_i32_1 = arith.constant 0 : i32
    return %c0_i32, %c0_i32_0 : i32, i32
  }
  func.func @transform_2(%arg0: i32) -> (i32, i32) {
    %c0_i32 = arith.constant 0 : i32
    %c0_i32_0 = arith.constant 0 : i32
    %c0_i32_1 = arith.constant 0 : i32
    return %c0_i32, %c0_i32_0 : i32, i32
  }
  func.func @transform_3(%arg0: i32) -> (i32, i32) {
    %c0_i32 = arith.constant 0 : i32
    %c0_i32_0 = arith.constant 0 : i32
    %c0_i32_1 = arith.constant 0 : i32
    return %c0_i32, %c0_i32_0 : i32, i32
  }
  func.func @transform_4(%arg0: i32) -> (i32, i32) {
    %c0_i32 = arith.constant 0 : i32
    %c0_i32_0 = arith.constant 0 : i32
    %c0_i32_1 = arith.constant 0 : i32
    return %c0_i32, %c0_i32_0 : i32, i32
  }
  func.func @transform_5(%arg0: i32) -> (i32, i32) {
    %c0_i32 = arith.constant 0 : i32
    %c0_i32_0 = arith.constant 0 : i32
    %c0_i32_1 = arith.constant 0 : i32
    return %c0_i32, %c0_i32_0 : i32, i32
  }
  func.func @transform_6(%arg0: i32) -> (i32, i32) {
    %c0_i32 = arith.constant 0 : i32
    %c0_i32_0 = arith.constant 0 : i32
    %c0_i32_1 = arith.constant 0 : i32
    return %c0_i32, %c0_i32_0 : i32, i32
  }
  func.func @transform_7(%arg0: i32) -> (i32, i32) {
    %c0_i32 = arith.constant 0 : i32
    %c0_i32_0 = arith.constant 0 : i32
    %c0_i32_1 = arith.constant 0 : i32
    return %c0_i32, %c0_i32_0 : i32, i32
  }
  func.func @transform_8(%arg0: i32) -> (i32, i32) {
    %c0_i32 = arith.constant 0 : i32
    %c0_i32_0 = arith.constant 0 : i32
    %c0_i32_1 = arith.constant 0 : i32
    return %c0_i32, %c0_i32_0 : i32, i32
  }
  func.func @transform_9(%arg0: i32) -> (i32, i32) {
    %c0_i32 = arith.constant 0 : i32
    %c0_i32_0 = arith.constant 0 : i32
    return %arg0, %c0_i32 : i32, i32
  }
}

</mosaic_0001>

<llo_original>
// kernel: tpu_custom_call.1
$region0: #{tpu_custom_call.1}
  #allocation0 [shape = 'u32[]', space=smem, size = 0x4, offset = 0x4, fixed_abs, tag = 'smem constant byte address 0x4 - core index']
  #allocation1 [shape = 'u32[72,128]{1,0:T(1,128)}', space=vmem, size = 0x9000, scoped, tag = 'internal scratch']
  %s0 = inlined_call_operand.hbm [shape: f32[8,16], index: 0, kind: input, shape index: {}]
  %s1 = inlined_call_operand.hbm [shape: f32[16,128], index: 1, kind: input, shape index: {}]
  %s2 = inlined_call_operand.vmem [shape: f32[1,128], index: 2, kind: input, shape index: {}]
  %s3 = inlined_call_operand.vmem [shape: f32[128,128], index: 3, kind: input, shape index: {}]
  %s4 = inlined_call_operand.vmem [shape: f32[1,128], index: 4, kind: input, shape index: {}]
  %s5 = inlined_call_operand.hbm [shape: f32[128,128], index: 5, kind: input, shape index: {}]
  %s6 = inlined_call_operand.vmem [shape: f32[1,128], index: 6, kind: input, shape index: {}]
  %s7 = inlined_call_operand.vmem [shape: f32[128,4], index: 7, kind: input, shape index: {}]
  %s8 = inlined_call_operand.vmem [shape: f32[1,4], index: 8, kind: input, shape index: {}]
  %s9 = inlined_call_operand.vmem [shape: f32[8,4], index: 9, kind: output, shape index: {}]
  %s10 = sld [smem:[#allocation0]]
  $region58: #{tpu_custom_call.1} parent=0
    _
  %s12 = ssub.s32 1, %s10
  %s13 = scalar_select 0, %s12, %s10
  $region1: #{tpu_custom_call.1} parent=0
    #allocation2 [shape = 'u8[4096]{0}', space=vmem, size = 0x1000, scoped, tag = 'input window, operand 0, single buffered']
    #allocation3 [shape = 's32[1]{0}', space=sflag, size = 0x4, scoped, tag = 'scoped memory for tpu_custom_call.1']
    #allocation4 [shape = 'u8[8192]{0}', space=vmem, size = 0x2000, scoped, tag = 'input window, operand 1, single buffered']
    #allocation5 [shape = 's32[1]{0}', space=sflag, size = 0x4, scoped, tag = 'scoped memory for tpu_custom_call.1']
    #allocation6 [shape = 'u8[65536]{0}', space=vmem, size = 0x10000, scoped, tag = 'input window, operand 5, single buffered']
    %14 = vsyncpa [#allocation3], 0
    %15 = vsyncpa [#allocation5], 0
    // Predicated region
    $region2: #{tpu_custom_call.1} parent=1 // pred_check
      _
    $region3: #{tpu_custom_call.1} parent=1 // pred_check_branch
      %17 = sbr.rel (0) target = $region5
    $region4: #{tpu_custom_call.1} parent=1 // pred_region
      %19 = vsyncadd [#allocation3], 0
      %s21 = sshll.u32 %s0, 4
      %s22 = int_to_ptr.hbm [resolvable:$true] %s21
      %s23 = sshll.u32 [#allocation2], 4
      %s24 = int_to_ptr.vmem [resolvable:$true] %s23
      %26 = dma.hbm_to_vmem [thread:$0]  %s22, 128, %s24, [#allocation3]
    $region5: #{tpu_custom_call.1} parent=1 // pred_fallthru
      _
    // Predicated region
    $region6: #{tpu_custom_call.1} parent=1 // pred_check
      _
    $region7: #{tpu_custom_call.1} parent=1 // pred_check_branch
      %28 = sbr.rel (0) target = $region9
    $region8: #{tpu_custom_call.1} parent=1 // pred_region
      %30 = vsyncadd [#allocation5], 0
      %s31 = sshll.u32 %s1, 4
      %s32 = int_to_ptr.hbm [resolvable:$true] %s31
      %s33 = sshll.u32 [#allocation4], 4
      %s34 = int_to_ptr.vmem [resolvable:$true] %s33
      %39 = dma.hbm_to_vmem [thread:$0]  %s32, 256, %s34, [#allocation5], 128, 128, 8
    $region9: #{tpu_custom_call.1} parent=1 // pred_fallthru
      _
    // Predicated region
    $region10: #{tpu_custom_call.1} parent=1 // pred_check
      _
    $region11: #{tpu_custom_call.1} parent=1 // pred_check_branch
      %41 = sbr.rel (0) target = $region13
    $region12: #{tpu_custom_call.1} parent=1 // pred_region
      _
    $region13: #{tpu_custom_call.1} parent=1 // pred_fallthru
      _
    // Predicated region
    $region14: #{tpu_custom_call.1} parent=1 // pred_check
      _
    $region15: #{tpu_custom_call.1} parent=1 // pred_check_branch
      %43 = sbr.rel (0) target = $region17
    $region16: #{tpu_custom_call.1} parent=1 // pred_region
      _
    $region17: #{tpu_custom_call.1} parent=1 // pred_fallthru
      _
    // Predicated region
    $region18: #{tpu_custom_call.1} parent=1 // pred_check
      _
    $region19: #{tpu_custom_call.1} parent=1 // pred_check_branch
      %45 = sbr.rel (0) target = $region21
    $region20: #{tpu_custom_call.1} parent=1 // pred_region
      _
    $region21: #{tpu_custom_call.1} parent=1 // pred_fallthru
      _
    // Predicated region
    $region22: #{tpu_custom_call.1} parent=1 // pred_check
      _
    $region23: #{tpu_custom_call.1} parent=1 // pred_check_branch
      %47 = sbr.rel (0) target = $region25
    $region24: #{tpu_custom_call.1} parent=1 // pred_region
      %49 = vsyncadd [#allocation5], 0
      %s50 = sshll.u32 %s5, 4
      %s51 = int_to_ptr.hbm [resolvable:$true] %s50
      %s52 = sshll.u32 [#allocation6], 4
      %s53 = int_to_ptr.vmem [resolvable:$true] %s52
      %58 = dma.hbm_to_vmem [thread:$0]  %s51, 2048, %s53, [#allocation5], 128, 128, 8
    $region25: #{tpu_custom_call.1} parent=1 // pred_fallthru
      _
    // Predicated region
    $region26: #{tpu_custom_call.1} parent=1 // pred_check
      _
    $region27: #{tpu_custom_call.1} parent=1 // pred_check_branch
      %60 = sbr.rel (0) target = $region29
    $region28: #{tpu_custom_call.1} parent=1 // pred_region
      _
    $region29: #{tpu_custom_call.1} parent=1 // pred_fallthru
      _
    // Predicated region
    $region30: #{tpu_custom_call.1} parent=1 // pred_check
      _
    $region31: #{tpu_custom_call.1} parent=1 // pred_check_branch
      %62 = sbr.rel (0) target = $region33
    $region32: #{tpu_custom_call.1} parent=1 // pred_region
      _
    $region33: #{tpu_custom_call.1} parent=1 // pred_fallthru
      _
    // Predicated region
    $region34: #{tpu_custom_call.1} parent=1 // pred_check
      _
    $region35: #{tpu_custom_call.1} parent=1 // pred_check_branch
      %64 = sbr.rel (0) target = $region37
    $region36: #{tpu_custom_call.1} parent=1 // pred_region
      _
    $region37: #{tpu_custom_call.1} parent=1 // pred_fallthru
      _
    // Predicated region
    $region38: #{tpu_custom_call.1} parent=1 // pred_check
      _
    $region39: #{tpu_custom_call.1} parent=1 // pred_check_branch
      %66 = sbr.rel (0) target = $region41
    $region40: #{tpu_custom_call.1} parent=1 // pred_region
      %68 = dma.done [#allocation3], 128
    $region41: #{tpu_custom_call.1} parent=1 // pred_fallthru
      _
    // Predicated region
    $region42: #{tpu_custom_call.1} parent=1 // pred_check
      _
    $region43: #{tpu_custom_call.1} parent=1 // pred_check_branch
      %70 = sbr.rel (0) target = $region45
    $region44: #{tpu_custom_call.1} parent=1 // pred_region
      %72 = dma.done [#allocation5], 256
    $region45: #{tpu_custom_call.1} parent=1 // pred_fallthru
      _
    // Predicated region
    $region46: #{tpu_custom_call.1} parent=1 // pred_check
      _
    $region47: #{tpu_custom_call.1} parent=1 // pred_check_branch
      %74 = sbr.rel (0) target = $region49
    $region48: #{tpu_custom_call.1} parent=1 // pred_region
      %76 = dma.done [#allocation5], 2048
    $region49: #{tpu_custom_call.1} parent=1 // pred_fallthru
      _
    %v77 = vld [vmem:[#allocation2] sm:$0xff]
    %v78 = vld [vmem:[#allocation4] sm:$0xff]
    %v79 = vld [vmem:[#allocation4 + $0x8] sm:$0xff]
    %v80 = vld [vmem:[%s2] sm:$0x1]
    %v82 = vperm.slane %v80, 0
    %vm84 = vcmask 130048
    %v86 = vsel %vm84, %v77, 0
    %88 = vmatpush.msra.mxu0 0.0
    %89 = vmatpush.msra.mxu0 0.0
    %90 = vmatpush.msra.mxu0 0.0
    %91 = vmatpush.msra.mxu0 0.0
    %92 = vmatpush.msra.mxu0 0.0
    %93 = vmatpush.msra.mxu0 0.0
    %94 = vmatpush.msra.mxu0 0.0
    %95 = vmatpush.msra.mxu0 0.0
    %96 = vmatpush.msra.mxu0 0.0
    %97 = vmatpush.msra.mxu0 0.0
    %98 = vmatpush.msra.mxu0 0.0
    %99 = vmatpush.msra.mxu0 0.0
    %100 = vmatpush.msra.mxu0 0.0
    %101 = vmatpush.msra.mxu0 0.0
    %102 = vmatpush.msra.mxu0 %v79
    %103 = vmatpush.msra.mxu0 %v78
    %104 = vmatmul.f32.gmra.mxu0 %v86
    %v105 = vpop.f32.mrf.mxu0
    %v106 = vadd.f32 %v82, %v105
    %107 = vdwg.mxu0
    %v108 = vmax.f32 %v106, 0.0
    %v109 = vld [vmem:[%s3] sm:$0xff]
    %v110 = vld [vmem:[%s3 + $0x8] sm:$0xff]
    %v111 = vld [vmem:[%s3 + $0x10] sm:$0xff]
    %v112 = vld [vmem:[%s3 + $0x18] sm:$0xff]
    %v113 = vld [vmem:[%s3 + $0x20] sm:$0xff]
    %v114 = vld [vmem:[%s3 + $0x28] sm:$0xff]
    %v115 = vld [vmem:[%s3 + $0x30] sm:$0xff]
    %v116 = vld [vmem:[%s3 + $0x38] sm:$0xff]
    %v117 = vld [vmem:[%s3 + $0x40] sm:$0xff]
    %v118 = vld [vmem:[%s3 + $0x48] sm:$0xff]
    %v119 = vld [vmem:[%s3 + $0x50] sm:$0xff]
    %v120 = vld [vmem:[%s3 + $0x58] sm:$0xff]
    %v121 = vld [vmem:[%s3 + $0x60] sm:$0xff]
    %v122 = vld [vmem:[%s3 + $0x68] sm:$0xff]
    %v123 = vld [vmem:[%s3 + $0x70] sm:$0xff]
    %v124 = vld [vmem:[%s3 + $0x78] sm:$0xff]
    %v125 = vld [vmem:[%s4] sm:$0x1]
    %v127 = vperm.slane %v125, 0
    %129 = vmatpush.msra.mxu0 %v124
    %130 = vmatpush.msra.mxu0 %v123
    %131 = vmatpush.msra.mxu0 %v122
    %132 = vmatpush.msra.mxu0 %v121
    %133 = vmatpush.msra.mxu0 %v120
    %134 = vmatpush.msra.mxu0 %v119
    %135 = vmatpush.msra.mxu0 %v118
    %136 = vmatpush.msra.mxu0 %v117
    %137 = vmatpush.msra.mxu0 %v116
    %138 = vmatpush.msra.mxu0 %v115
    %139 = vmatpush.msra.mxu0 %v114
    %140 = vmatpush.msra.mxu0 %v113
    %141 = vmatpush.msra.mxu0 %v112
    %142 = vmatpush.msra.mxu0 %v111
    %143 = vmatpush.msra.mxu0 %v110
    %144 = vmatpush.msra.mxu0 %v109
    %145 = vmatmul.f32.gmra.mxu0 %v108
    %v146 = vpop.f32.mrf.mxu0
    %v147 = vadd.f32 %v127, %v146
    %148 = vdwg.mxu0
    %v149 = vmax.f32 %v147, 0.0
    %v150 = vld [vmem:[#allocation6] sm:$0xff]
    %v151 = vld [vmem:[#allocation6 + $0x8] sm:$0xff]
    %v152 = vld [vmem:[#allocation6 + $0x10] sm:$0xff]
    %v153 = vld [vmem:[#allocation6 + $0x18] sm:$0xff]
    %v154 = vld [vmem:[#allocation6 + $0x20] sm:$0xff]
    %v155 = vld [vmem:[#allocation6 + $0x28] sm:$0xff]
    %v156 = vld [vmem:[#allocation6 + $0x30] sm:$0xff]
    %v157 = vld [vmem:[#allocation6 + $0x38] sm:$0xff]
    %v158 = vld [vmem:[#allocation6 + $0x40] sm:$0xff]
    %v159 = vld [vmem:[#allocation6 + $0x48] sm:$0xff]
    %v160 = vld [vmem:[#allocation6 + $0x50] sm:$0xff]
    %v161 = vld [vmem:[#allocation6 + $0x58] sm:$0xff]
    %v162 = vld [vmem:[#allocation6 + $0x60] sm:$0xff]
    %v163 = vld [vmem:[#allocation6 + $0x68] sm:$0xff]
    %v164 = vld [vmem:[#allocation6 + $0x70] sm:$0xff]
    %v165 = vld [vmem:[#allocation6 + $0x78] sm:$0xff]
    %v166 = vld [vmem:[%s6] sm:$0x1]
    %v168 = vperm.slane %v166, 0
    %170 = vmatpush.msra.mxu0 %v165
    %171 = vmatpush.msra.mxu0 %v164
    %172 = vmatpush.msra.mxu0 %v163
    %173 = vmatpush.msra.mxu0 %v162
    %174 = vmatpush.msra.mxu0 %v161
    %175 = vmatpush.msra.mxu0 %v160
    %176 = vmatpush.msra.mxu0 %v159
    %177 = vmatpush.msra.mxu0 %v158
    %178 = vmatpush.msra.mxu0 %v157
    %179 = vmatpush.msra.mxu0 %v156
    %180 = vmatpush.msra.mxu0 %v155
    %181 = vmatpush.msra.mxu0 %v154
    %182 = vmatpush.msra.mxu0 %v153
    %183 = vmatpush.msra.mxu0 %v152
    %184 = vmatpush.msra.mxu0 %v151
    %185 = vmatpush.msra.mxu0 %v150
    %186 = vmatmul.f32.gmra.mxu0 %v149
    %v187 = vpop.f32.mrf.mxu0
    %v188 = vadd.f32 %v168, %v187
    %189 = vdwg.mxu0
    %v190 = vadd.f32 %v188, 3.0
    %v191 = vmax.f32 %v190, 0.0
    %v192 = vmin.f32 %v191, 6.0
    %v193 = vmul.f32 %v188, %v192
    %v194 = vmul.f32 %v193, 0.16666667
    %v195 = vld [vmem:[%s7] sm:$0xff]
    %v196 = vld [vmem:[%s7 + $0x8] sm:$0xff]
    %v197 = vld [vmem:[%s7 + $0x10] sm:$0xff]
    %v198 = vld [vmem:[%s7 + $0x18] sm:$0xff]
    %v199 = vld [vmem:[%s7 + $0x20] sm:$0xff]
    %v200 = vld [vmem:[%s7 + $0x28] sm:$0xff]
    %v201 = vld [vmem:[%s7 + $0x30] sm:$0xff]
    %v202 = vld [vmem:[%s7 + $0x38] sm:$0xff]
    %v203 = vld [vmem:[%s7 + $0x40] sm:$0xff]
    %v204 = vld [vmem:[%s7 + $0x48] sm:$0xff]
    %v205 = vld [vmem:[%s7 + $0x50] sm:$0xff]
    %v206 = vld [vmem:[%s7 + $0x58] sm:$0xff]
    %v207 = vld [vmem:[%s7 + $0x60] sm:$0xff]
    %v208 = vld [vmem:[%s7 + $0x68] sm:$0xff]
    %v209 = vld [vmem:[%s7 + $0x70] sm:$0xff]
    %v210 = vld [vmem:[%s7 + $0x78] sm:$0xff]
    %v211 = vld [vmem:[%s8] sm:$0x1]
    %v213 = vperm.slane %v211, 0
    %215 = vmatpush.msra.mxu0 %v210
    %216 = vmatpush.msra.mxu0 %v209
    %217 = vmatpush.msra.mxu0 %v208
    %218 = vmatpush.msra.mxu0 %v207
    %219 = vmatpush.msra.mxu0 %v206
    %220 = vmatpush.msra.mxu0 %v205
    %221 = vmatpush.msra.mxu0 %v204
    %222 = vmatpush.msra.mxu0 %v203
    %223 = vmatpush.msra.mxu0 %v202
    %224 = vmatpush.msra.mxu0 %v201
    %225 = vmatpush.msra.mxu0 %v200
    %226 = vmatpush.msra.mxu0 %v199
    %227 = vmatpush.msra.mxu0 %v198
    %228 = vmatpush.msra.mxu0 %v197
    %229 = vmatpush.msra.mxu0 %v196
    %230 = vmatpush.msra.mxu0 %v195
    %231 = vmatmul.f32.gmra.mxu0 %v194
    %v232 = vpop.f32.mrf.mxu0
    %v233 = vadd.f32 %v213, %v232
    %234 = vdwg.mxu0
    %v235 = vtanh.pop %v233
    %vm236 = vcmask 31744
    %237 = vst.msk [vmem:[%s9] sm:$0xff] %vm236, %v235
    // Predicated region
    $region50: #{tpu_custom_call.1} parent=1 // pred_check
      _
    $region51: #{tpu_custom_call.1} parent=1 // pred_check_branch
      %239 = sbr.rel (0) target = $region53
    $region52: #{tpu_custom_call.1} parent=1 // pred_region
      _
    $region53: #{tpu_custom_call.1} parent=1 // pred_fallthru
      _
    // Predicated region
    $region54: #{tpu_custom_call.1} parent=1 // pred_check
      _
    $region55: #{tpu_custom_call.1} parent=1 // pred_check_branch
      %241 = sbr.rel (0) target = $region57
    $region56: #{tpu_custom_call.1} parent=1 // pred_region
      _
    $region57: #{tpu_custom_call.1} parent=1 // pred_fallthru
      _
    %242 = vsyncpa [#allocation3], 1
    %243 = vsyncpa [#allocation5], 1

</llo_original>
